<compile_context>
chip_gen: v7x
topology: tpu7x:2x2x1
jax: 0.10.0
libtpu: 0.0.40
codegen_flags: <defaults>
</compile_context>

<pallas_src>
import math

import jax
import jax.numpy as jnp
from jax import lax
from jax.experimental import pallas as pl
from jax.experimental.pallas import tpu as pltpu

# ----------------------------------------------------------------------------
# Config (mirrors NSDconfig fields the module actually uses)
# ----------------------------------------------------------------------------
ALPHABET = "abcdefghijklmnopqrstuvwxyz.'SEP "   # default alphabet, 32 tokens
VOCAB_SIZE = len(ALPHABET)                      # 32
EMBED_DIM = 32
MAX_LEN = 8
LEARNED_EMBEDDING = False                       # -> sinusoidal positional encoding

TOK_TO_INT = {c: i for i, c in enumerate(ALPHABET)}
INT_TO_TOK = {i: c for i, c in enumerate(ALPHABET)}


# ----------------------------------------------------------------------------
# Python glue: tokenization / padding (no tensor compute)
# ----------------------------------------------------------------------------
def encode_string(seq: str, max_len: int, full_sequence: bool = False):
    if full_sequence:
        seq = "S" + seq + "E"
    seq = list(seq)
    assert len(seq) <= max_len, "sequence longer than max_len"
    while len(seq) < max_len:
        seq.append("P")
    return [TOK_TO_INT[tok] for tok in seq]


# ----------------------------------------------------------------------------
# Helpers
# ----------------------------------------------------------------------------
def _round_up(x: int, m: int) -> int:
    return ((x + m - 1) // m) * m


def _position_encoding(seq_len: int, dim_model: int) -> jax.Array:
    """Exactly the torch formula: where(dim%2==0, sin(phase), cos(phase))."""
    pos = jnp.arange(seq_len, dtype=jnp.float32).reshape(seq_len, 1)
    dim = jnp.arange(dim_model, dtype=jnp.float32).reshape(1, dim_model)
    phase = pos / jnp.power(jnp.float32(10000.0), dim / jnp.float32(dim_model))
    return jnp.where(dim.astype(jnp.int32) % 2 == 0, jnp.sin(phase), jnp.cos(phase))


# ----------------------------------------------------------------------------
# Pallas kernel: folded one-hot gather (MXU) + resident-PE add, lane-dense out
# ----------------------------------------------------------------------------
def _embed_kernel(ids_ref, tbl_ref, pe_ref, out_ref):
    # ids_ref : (TMF, FOLD) int32, already offset by slot*V
    # tbl_ref : (FOLD*V, FOLD*D) f32 block-diagonal table (resident)
    # pe_ref  : (TMF, FOLD*D)    f32 positional-encoding slab (resident)
    # out_ref : (TMF, FOLD*D)    f32
    ids = ids_ref[...]
    tmf, fold = ids.shape
    fv = tbl_ref.shape[0]                                     # FOLD * V

    lane = lax.broadcasted_iota(jnp.int32, (tmf, fv), 1)
    hit = lane == ids[:, 0:1]
    for j in range(1, fold):                                  # small static unroll
        hit = jnp.logical_or(hit, lane == ids[:, j:j + 1])
    onehot = hit.astype(jnp.float32)                          # (TMF, FOLD*V)

    tok = jnp.dot(onehot, tbl_ref[...],
                  preferred_element_type=jnp.float32)         # (TMF, FOLD*D)
    out_ref[...] = tok + pe_ref[...]


def embedding_block_forward(token_ids: jax.Array, emb_table: jax.Array,
                            *, tile_rows_target: int = 4096) -> jax.Array:
    """token_ids: (B, T) int32, emb_table: (V, D) f32 -> (B, T, D) f32."""
    B, T = token_ids.shape
    V, D = emb_table.shape
    assert D <= 128 and 128 % D == 0, "embed_dim must divide 128 for lane fold"
    # TODO(synk): for embed_dim that does not divide 128, fall back to an
    # unfolded (rows, D) layout.
    F = 128 // D                                  # tokens folded per 128-lane row
    N = B * T

    # Raw-row tile granularity: multiple of T (PE slab repeats per tile) and of
    # 8*F (folded sublane alignment).
    g = math.lcm(T, 8 * F)
    TM = min(_round_up(N, g), _round_up(tile_rows_target, g))  # raw rows / step
    N_pad = _round_up(N, TM)
    TMF = TM // F                                 # folded rows per step
    NF_pad = N_pad // F
    grid = (N_pad // TM,)

    # ids, flattened batch-major / seq-minor, padded, folded, and pre-offset so
    # slot j indexes block j of the block-diagonal table.
    ids = token_ids.reshape(N).astype(jnp.int32)
    ids = jnp.pad(ids, (0, N_pad - N))            # pad rows are sliced off below
    ids2d = ids.reshape(NF_pad, F) + (jnp.arange(F, dtype=jnp.int32) * V)[None, :]

    # Block-diagonal embedding table: (F*V, F*D), block (j, j) = emb_table.
    table_block = jnp.kron(jnp.eye(F, dtype=jnp.float32),
                           emb_table.astype(jnp.float32))

    # Positional encoding for one tile of TM raw rows, in the folded layout.
    pe = _position_encoding(T, D)                               # (T, D)
    pe_tile = jnp.tile(pe, (TM // T, 1)).reshape(TMF, F * D)    # (TMF, 128)

    out_folded = pl.pallas_call(
        _embed_kernel,
        out_shape=jax.ShapeDtypeStruct((NF_pad, F * D), jnp.float32),
        grid=grid,
        in_specs=[
            pl.BlockSpec((TMF, F), lambda i: (i, 0)),           # ids (tiled)
            pl.BlockSpec((F * V, F * D), lambda i: (0, 0)),     # table (resident)
            pl.BlockSpec((TMF, F * D), lambda i: (0, 0)),       # PE    (resident)
        ],
        out_specs=pl.BlockSpec((TMF, F * D), lambda i: (i, 0)),
        compiler_params=pltpu.CompilerParams(
            dimension_semantics=("parallel",)),
    )(ids2d, table_block, pe_tile)

    # Folded rows flatten to the same row-major memory layout as (N_pad, D).
    return out_folded.reshape(N_pad, D)[:N].reshape(B, T, D)


# ----------------------------------------------------------------------------
# Pure-JAX reference (for correctness check)
# ----------------------------------------------------------------------------
def reference_forward(token_ids, emb_table):
    B, T = token_ids.shape
    V, D = emb_table.shape
    tok = emb_table[token_ids]                                   # (B, T, D)
    pos = jnp.arange(T, dtype=jnp.float32).reshape(1, T, 1)
    dim = jnp.arange(D, dtype=jnp.float32).reshape(1, 1, D)
    phase = pos / jnp.power(10000.0, dim / D)
    pe = jnp.where(dim.astype(jnp.int32) % 2 == 0, jnp.sin(phase), jnp.cos(phase))
    return tok + pe


# TODO(synk): the `target=True` branch of forward() only returns integer token
# ids (no tensor compute); it stays in the Python glue (encode_string).
# TODO(synk): learned positional embedding (config.learned_embedding=True) is
# not implemented; default config uses the sinusoidal encoding handled here.

if __name__ == "__main__":
    key = jax.random.PRNGKey(0)
    k_emb, k_ids = jax.random.split(key)

    # Deterministic parameter init: nn.Embedding default is N(0, 1).
    emb_table = jax.random.normal(k_emb, (VOCAB_SIZE, EMBED_DIM), dtype=jnp.float32)

    # --- primary check: module-sized batch (B=2, T=8, D=32) -----------------
    batch_strings = ["hello.", "spike"]
    token_ids = jnp.asarray(
        [encode_string(s, MAX_LEN) for s in batch_strings], dtype=jnp.int32
    )  # (2, 8)

    out = embedding_block_forward(token_ids, emb_table)
    out = jax.block_until_ready(out)

    ref = reference_forward(token_ids, emb_table)
    assert out.shape == (len(batch_strings), MAX_LEN, EMBED_DIM)
    assert out.dtype == jnp.float32
    assert jnp.allclose(out, ref, atol=1e-5, rtol=1e-5), "mismatch vs reference"

    # --- secondary check: exercises multi-step grid + row padding ----------
    big_ids = jax.random.randint(k_ids, (300, MAX_LEN), 0, VOCAB_SIZE, dtype=jnp.int32)
    out_big = embedding_block_forward(big_ids, emb_table, tile_rows_target=1024)
    out_big = jax.block_until_ready(out_big)
    ref_big = reference_forward(big_ids, emb_table)
    assert jnp.allclose(out_big, ref_big, atol=1e-5, rtol=1e-5), "tiled mismatch"

    print("KERNEL_OK")
</pallas_src>

<mosaic_0001>
module attributes {stable_mosaic.version = 11 : i64} {
  func.func @_embed_kernel(%arg0: i32, %arg1: memref<8x4xi32, #tpu.memory_space<vmem>>, %arg2: memref<128x128xf32, #tpu.memory_space<vmem>>, %arg3: memref<8x128xf32, #tpu.memory_space<vmem>>, %arg4: memref<8x128xf32, #tpu.memory_space<vmem>>) attributes {dimension_semantics = [#tpu.dimension_semantics<parallel>], iteration_bounds = array<i64: 1>, scalar_prefetch = 0 : i64, scratch_operands = 0 : i64, tpu.core_type = #tpu.core_type<tc>, window_params = [{transform_indices = @transform_0, window_bounds = array<i64: 8, 4>}, {pipeline_mode = #tpu.pipeline_mode<synchronous>, transform_indices = @transform_1, window_bounds = array<i64: 128, 128>}, {pipeline_mode = #tpu.pipeline_mode<synchronous>, transform_indices = @transform_2, window_bounds = array<i64: 8, 128>}, {transform_indices = @transform_3, window_bounds = array<i64: 8, 128>}]} {
    %c0 = arith.constant 0 : index
    %c0_0 = arith.constant 0 : index
    %0 = vector.load %arg1[%c0, %c0_0] : memref<8x4xi32, #tpu.memory_space<vmem>>, vector<8x4xi32>
    %1 = tpu.iota {dimensions = array<i32: 1>} : vector<8x128xi32>
    %2 = vector.extract_strided_slice %0 {offsets = [0, 0], sizes = [8, 1], strides = [1, 1]} : vector<8x4xi32> to vector<8x1xi32>
    %3 = vector.broadcast %2 : vector<8x1xi32> to vector<8x128xi32>
    %4 = arith.cmpi eq, %1, %3 : vector<8x128xi32>
    %5 = vector.extract_strided_slice %0 {offsets = [0, 1], sizes = [8, 1], strides = [1, 1]} : vector<8x4xi32> to vector<8x1xi32>
    %6 = vector.broadcast %5 : vector<8x1xi32> to vector<8x128xi32>
    %7 = arith.cmpi eq, %1, %6 : vector<8x128xi32>
    %8 = arith.ori %4, %7 : vector<8x128xi1>
    %9 = vector.extract_strided_slice %0 {offsets = [0, 2], sizes = [8, 1], strides = [1, 1]} : vector<8x4xi32> to vector<8x1xi32>
    %10 = vector.broadcast %9 : vector<8x1xi32> to vector<8x128xi32>
    %11 = arith.cmpi eq, %1, %10 : vector<8x128xi32>
    %12 = arith.ori %8, %11 : vector<8x128xi1>
    %13 = vector.extract_strided_slice %0 {offsets = [0, 3], sizes = [8, 1], strides = [1, 1]} : vector<8x4xi32> to vector<8x1xi32>
    %14 = vector.broadcast %13 : vector<8x1xi32> to vector<8x128xi32>
    %15 = arith.cmpi eq, %1, %14 : vector<8x128xi32>
    %16 = arith.ori %12, %15 : vector<8x128xi1>
    %17 = arith.extui %16 : vector<8x128xi1> to vector<8x128xi32>
    %18 = arith.sitofp %17 : vector<8x128xi32> to vector<8x128xf32>
    %c0_1 = arith.constant 0 : index
    %c0_2 = arith.constant 0 : index
    %19 = vector.load %arg2[%c0_1, %c0_2] : memref<128x128xf32, #tpu.memory_space<vmem>>, vector<128x128xf32>
    %cst = arith.constant dense<0.000000e+00> : vector<8x128xf32>
    %20 = tpu.matmul %18, %19, %cst {dimension_numbers = #tpu.dot_dimension_numbers<[1], [0], [0], [1], [0, 0, 1, 1], [], []>} : vector<8x128xf32>, vector<128x128xf32>, vector<8x128xf32> -> vector<8x128xf32>
    %c0_3 = arith.constant 0 : index
    %c0_4 = arith.constant 0 : index
    %21 = vector.load %arg3[%c0_3, %c0_4] : memref<8x128xf32, #tpu.memory_space<vmem>>, vector<8x128xf32>
    %22 = arith.addf %20, %21 : vector<8x128xf32>
    %c0_5 = arith.constant 0 : index
    %c0_6 = arith.constant 0 : index
    %23 = vector.load %arg4[%c0_5, %c0_6] : memref<8x128xf32, #tpu.memory_space<vmem>>, vector<8x128xf32>
    tpu.vector_store %arg4[%c0_5, %c0_6], %22 {strides = array<i32>} : memref<8x128xf32, #tpu.memory_space<vmem>>, vector<8x128xf32>,
    return
  }
  func.func @transform_0(%arg0: i32) -> (i32, i32) {
    %c0_i32 = arith.constant 0 : i32
    %c0_i32_0 = arith.constant 0 : i32
    return %arg0, %c0_i32 : i32, i32
  }
  func.func @transform_1(%arg0: i32) -> (i32, i32) {
    %c0_i32 = arith.constant 0 : i32
    %c0_i32_0 = arith.constant 0 : i32
    %c0_i32_1 = arith.constant 0 : i32
    return %c0_i32, %c0_i32_0 : i32, i32
  }
  func.func @transform_2(%arg0: i32) -> (i32, i32) {
    %c0_i32 = arith.constant 0 : i32
    %c0_i32_0 = arith.constant 0 : i32
    %c0_i32_1 = arith.constant 0 : i32
    return %c0_i32, %c0_i32_0 : i32, i32
  }
  func.func @transform_3(%arg0: i32) -> (i32, i32) {
    %c0_i32 = arith.constant 0 : i32
    %c0_i32_0 = arith.constant 0 : i32
    return %arg0, %c0_i32 : i32, i32
  }
}

</mosaic_0001>

<llo_original>
// kernel: tpu_custom_call.1
$region0: #{tpu_custom_call.1}
  #allocation0 [shape = 'u32[]', space=smem, size = 0x4, offset = 0x4, fixed_abs, tag = 'smem constant byte address 0x4 - core index']
  #allocation1 [shape = 'u32[144,128]{1,0:T(1,128)}', space=vmem, size = 0x12000, scoped, tag = 'internal scratch']
  %s0 = inlined_call_operand.vmem [shape: s32[8,4], index: 0, kind: input, shape index: {}]
  %s1 = inlined_call_operand.hbm [shape: f32[128,128], index: 1, kind: input, shape index: {}]
  %s2 = inlined_call_operand.vmem [shape: f32[8,128], index: 2, kind: input, shape index: {}]
  %s3 = inlined_call_operand.hbm [shape: f32[8,128], index: 3, kind: output, shape index: {}]
  %s4 = sld [smem:[#allocation0]]
  $region26: #{tpu_custom_call.1} parent=0
    _
  %s6 = ssub.s32 1, %s4
  %s7 = scalar_select 0, %s6, %s4
  $region1: #{tpu_custom_call.1} parent=0
    #allocation2 [shape = 'u8[65536]{0}', space=vmem, size = 0x10000, scoped, tag = 'input window, operand 1, single buffered']
    #allocation3 [shape = 's32[1]{0}', space=sflag, size = 0x4, scoped, tag = 'scoped memory for tpu_custom_call.1']
    #allocation4 [shape = 's32[1]{0}', space=sflag, size = 0x4, scoped, tag = 'scoped memory for tpu_custom_call.1']
    #allocation5 [shape = 'u8[4096]{0}', space=vmem, size = 0x1000, scoped, tag = 'output window, operand 0, single buffered']
    %8 = vsyncpa [#allocation3], 0
    %9 = vsyncpa [#allocation4], 0
    // Predicated region
    $region2: #{tpu_custom_call.1} parent=1 // pred_check
      _
    $region3: #{tpu_custom_call.1} parent=1 // pred_check_branch
      %11 = sbr.rel (0) target = $region5
    $region4: #{tpu_custom_call.1} parent=1 // pred_region
      _
    $region5: #{tpu_custom_call.1} parent=1 // pred_fallthru
      _
    // Predicated region
    $region6: #{tpu_custom_call.1} parent=1 // pred_check
      _
    $region7: #{tpu_custom_call.1} parent=1 // pred_check_branch
      %13 = sbr.rel (0) target = $region9
    $region8: #{tpu_custom_call.1} parent=1 // pred_region
      %s15 = ssub.s32 2048, 2048
      %16 = vsyncadd [#allocation3], %s15
      %s17 = sshll.u32 [#allocation2], 4
      %s18 = int_to_ptr.vmem [resolvable:$true] %s17
      %23 = dma.hbm_to_vmem [thread:$0]  %s1, 2048, %s18, [#allocation3], 128, 128, 8
    $region9: #{tpu_custom_call.1} parent=1 // pred_fallthru
      _
    // Predicated region
    $region10: #{tpu_custom_call.1} parent=1 // pred_check
      _
    $region11: #{tpu_custom_call.1} parent=1 // pred_check_branch
      %25 = sbr.rel (0) target = $region13
    $region12: #{tpu_custom_call.1} parent=1 // pred_region
      _
    $region13: #{tpu_custom_call.1} parent=1 // pred_fallthru
      _
    // Predicated region
    $region14: #{tpu_custom_call.1} parent=1 // pred_check
      _
    $region15: #{tpu_custom_call.1} parent=1 // pred_check_branch
      %27 = sbr.rel (0) target = $region17
    $region16: #{tpu_custom_call.1} parent=1 // pred_region
      %28 = dma.done [#allocation3], 2048
    $region17: #{tpu_custom_call.1} parent=1 // pred_fallthru
      _
    %v29 = vld [vmem:[%s0] sm:$0xff]
    %v30 = vlaneseq
    %v31 = vand.u32 %v30, 127
    %32 = vset.pattern.permute.xlu0 0
    %33 = vperm.xlu0 %32, %v29
    %v34 = vpop.permute.xlu0 %33
    %vm35 = vcmp.eq.s32.totalorder %v31, %v34
    %36 = vset.pattern.permute.xlu0 1
    %37 = vperm.xlu0 %36, %v29
    %v38 = vpop.permute.xlu0 %37
    %vm39 = vcmp.eq.s32.totalorder %v31, %v38
    %vm40 = vmor %vm35, %vm39
    %41 = vset.pattern.permute.xlu0 2
    %42 = vperm.xlu0 %41, %v29
    %v43 = vpop.permute.xlu0 %42
    %vm44 = vcmp.eq.s32.totalorder %v31, %v43
    %vm45 = vmor %vm40, %vm44
    %46 = vset.pattern.permute.xlu0 3
    %47 = vperm.xlu0 %46, %v29
    %v48 = vpop.permute.xlu0 %47
    %vm49 = vcmp.eq.s32.totalorder %v31, %v48
    %vm50 = vmor %vm45, %vm49
    %v51 = vsel %vm50, 1, 0
    %v52 = vcvt.s32.f32 %v51
    %v53 = vld [vmem:[#allocation2] sm:$0xff]
    %v54 = vld [vmem:[#allocation2 + $0x8] sm:$0xff]
    %v55 = vld [vmem:[#allocation2 + $0x10] sm:$0xff]
    %v56 = vld [vmem:[#allocation2 + $0x18] sm:$0xff]
    %v57 = vld [vmem:[#allocation2 + $0x20] sm:$0xff]
    %v58 = vld [vmem:[#allocation2 + $0x28] sm:$0xff]
    %v59 = vld [vmem:[#allocation2 + $0x30] sm:$0xff]
    %v60 = vld [vmem:[#allocation2 + $0x38] sm:$0xff]
    %v61 = vld [vmem:[#allocation2 + $0x40] sm:$0xff]
    %v62 = vld [vmem:[#allocation2 + $0x48] sm:$0xff]
    %v63 = vld [vmem:[#allocation2 + $0x50] sm:$0xff]
    %v64 = vld [vmem:[#allocation2 + $0x58] sm:$0xff]
    %v65 = vld [vmem:[#allocation2 + $0x60] sm:$0xff]
    %v66 = vld [vmem:[#allocation2 + $0x68] sm:$0xff]
    %v67 = vld [vmem:[#allocation2 + $0x70] sm:$0xff]
    %v68 = vld [vmem:[#allocation2 + $0x78] sm:$0xff]
    %v69 = vld [vmem:[%s2] sm:$0xff]
    %70 = vmatprep.subr.mxu0 0.0
    %71 = vmatpush1.msra.mxu0 %v53
    %72 = vmatprep.subr.mxu0 0.0
    %73 = vmatpush1.msra.mxu0 %v54
    %74 = vmatprep.subr.mxu0 0.0
    %75 = vmatpush1.msra.mxu0 %v55
    %76 = vmatprep.subr.mxu0 0.0
    %77 = vmatpush1.msra.mxu0 %v56
    %78 = vmatprep.subr.mxu0 0.0
    %79 = vmatpush1.msra.mxu0 %v57
    %80 = vmatprep.subr.mxu0 0.0
    %81 = vmatpush1.msra.mxu0 %v58
    %82 = vmatprep.subr.mxu0 0.0
    %83 = vmatpush1.msra.mxu0 %v59
    %84 = vmatprep.subr.mxu0 0.0
    %85 = vmatpush1.msra.mxu0 %v60
    %86 = vmatprep.subr.mxu0 0.0
    %87 = vmatpush1.msra.mxu0 %v61
    %88 = vmatprep.subr.mxu0 0.0
    %89 = vmatpush1.msra.mxu0 %v62
    %90 = vmatprep.subr.mxu0 0.0
    %91 = vmatpush1.msra.mxu0 %v63
    %92 = vmatprep.subr.mxu0 0.0
    %93 = vmatpush1.msra.mxu0 %v64
    %94 = vmatprep.subr.mxu0 0.0
    %95 = vmatpush1.msra.mxu0 %v65
    %96 = vmatprep.subr.mxu0 0.0
    %97 = vmatpush1.msra.mxu0 %v66
    %98 = vmatprep.subr.mxu0 0.0
    %99 = vmatpush1.msra.mxu0 %v67
    %100 = vmatprep.subr.mxu0 0.0
    %101 = vmatpush1.msra.mxu0 %v68
    %102 = vmatprep.subr.mxu0 0.0
    %103 = vmatpush1.msra.mxu0 0.0
    %104 = vmatprep.subr.mxu0 0.0
    %105 = vmatpush1.msra.mxu0 0.0
    %106 = vmatprep.subr.mxu0 0.0
    %107 = vmatpush1.msra.mxu0 0.0
    %108 = vmatprep.subr.mxu0 0.0
    %109 = vmatpush1.msra.mxu0 0.0
    %110 = vmatprep.subr.mxu0 0.0
    %111 = vmatpush1.msra.mxu0 0.0
    %112 = vmatprep.subr.mxu0 0.0
    %113 = vmatpush1.msra.mxu0 0.0
    %114 = vmatprep.subr.mxu0 0.0
    %115 = vmatpush1.msra.mxu0 0.0
    %116 = vmatprep.subr.mxu0 0.0
    %117 = vmatpush1.msra.mxu0 0.0
    %118 = vmatprep.subr.mxu0 0.0
    %119 = vmatpush1.msra.mxu0 0.0
    %120 = vmatprep.subr.mxu0 0.0
    %121 = vmatpush1.msra.mxu0 0.0
    %122 = vmatprep.subr.mxu0 0.0
    %123 = vmatpush1.msra.mxu0 0.0
    %124 = vmatprep.subr.mxu0 0.0
    %125 = vmatpush1.msra.mxu0 0.0
    %126 = vmatprep.subr.mxu0 0.0
    %127 = vmatpush1.msra.mxu0 0.0
    %128 = vmatprep.subr.mxu0 0.0
    %129 = vmatpush1.msra.mxu0 0.0
    %130 = vmatprep.subr.mxu0 0.0
    %131 = vmatpush1.msra.mxu0 0.0
    %132 = vmatprep.subr.mxu0 0.0
    %133 = vmatpush1.msra.mxu0 0.0
    %134 = vmatprep.mubr.f32.mxu0 0.0
    %135 = vmatmul.mubr.f32.gmra.mrb[0].mxu0 %v52
    %v136 = vpop.f32.mrb[0].mxu0
    %v137 = vadd.f32 %v69, %v136
    %v138 = vpop.f32.mrb[0].mxu0
    %139 = vdwg.mxu0
    %140 = vst [vmem:[#allocation5] sm:$0xff] %v137
    // Predicated region
    $region18: #{tpu_custom_call.1} parent=1 // pred_check
      _
    $region19: #{tpu_custom_call.1} parent=1 // pred_check_branch
      %142 = sbr.rel (0) target = $region21
    $region20: #{tpu_custom_call.1} parent=1 // pred_region
      %s144 = ssub.s32 128, 128
      %145 = vsyncadd [#allocation4], %s144
      %s147 = sshll.u32 [#allocation5], 4
      %s148 = int_to_ptr.vmem [resolvable:$true] %s147
      %150 = dma.vmem_to_hbm [thread:$0]  %s148, 128, %s3, [#allocation4]
    $region21: #{tpu_custom_call.1} parent=1 // pred_fallthru
      _
    // Predicated region
    $region22: #{tpu_custom_call.1} parent=1 // pred_check
      _
    $region23: #{tpu_custom_call.1} parent=1 // pred_check_branch
      %152 = sbr.rel (0) target = $region25
    $region24: #{tpu_custom_call.1} parent=1 // pred_region
      %153 = dma.done [#allocation4], 128
    $region25: #{tpu_custom_call.1} parent=1 // pred_fallthru
      _
    %154 = vsyncpa [#allocation3], 1
    %155 = vsyncpa [#allocation4], 1

</llo_original>
